<compile_context>
chip_gen: v7x
topology: tpu7x:2x2x1
jax: 0.10.0
libtpu: 0.0.40
codegen_flags: <defaults>
</compile_context>

<pallas_src>
import functools

import jax
import jax.numpy as jnp
from jax.experimental import pallas as pl
from jax.experimental.pallas import tpu as pltpu


def _lrprobe_kernel(x_ref, w_ref, o_ref, acc_ref, *, d_in, block_k):
    # x_ref: [TB, TK] tile, w_ref: [1, TK] weight slice, o_ref: [TB, 1],
    # acc_ref: [TB, 1] f32 accumulator (resident across the feature axis).
    k = pl.program_id(1)

    @pl.when(k == 0)
    def _():
        acc_ref[...] = jnp.zeros_like(acc_ref)

    x = x_ref[...]
    w = w_ref[...]
    if d_in % block_k != 0:
        # Static-shape mask for the partial last feature block: OOB VMEM may
        # hold NaN/Inf garbage, so zero both operands' invalid lanes.
        col = jax.lax.broadcasted_iota(jnp.int32, (1, block_k), 1) + k * block_k
        valid = col < d_in
        x = jnp.where(valid, x, 0)
        w = jnp.where(valid, w, 0)

    # Native-dtype VPU multiply (broadcast over rows) + f32-accumulated lane
    # reduce (XLU).  No full-tile f32 temp for bf16 inputs.
    acc_ref[...] += jnp.sum(x * w, axis=-1, keepdims=True, dtype=jnp.float32)

    @pl.when(k == pl.num_programs(1) - 1)
    def _():
        o_ref[...] = jax.nn.sigmoid(acc_ref[...]).astype(o_ref.dtype)


def _round_up(v, m):
    return ((v + m - 1) // m) * m


def _vmem_budget():
    """Generation-aware scoped-VMEM limit and per-x-tile byte budget."""
    try:
        cap = pltpu.get_tpu_info().vmem_capacity_bytes
    except Exception:  # conservative fallback (v7x per-TC physical VMEM)
        cap = 64 << 20
    # Leave headroom for compiler temporaries; never request more than 96 MiB.
    vmem_limit = min((cap * 3) // 4, 96 << 20)
    # x is double-buffered (2 tiles) plus weight / output / accumulator slack.
    tile_budget = min(vmem_limit // 4, 16 << 20)
    return vmem_limit, tile_budget


def _choose_tiles(B, D, itemsize, tile_budget):
    """Pick (TB, TK): sublane-aligned batch tile, 128-aligned feature tile."""
    sub = {4: 8, 2: 16, 1: 32}.get(itemsize, 8)

    # Feature (reduction) tiling only if even `sub` rows of full D overflow
    # the budget; otherwise keep the whole row per tile (single k step).
    if sub * D * itemsize <= tile_budget:
        tk = D
    else:
        tk = max(128, (tile_budget // (sub * itemsize)) // 128 * 128)
        tk = min(tk, _round_up(D, 128))

    # Batch tile: as many rows as the byte budget allows (no row cap).
    tb = tile_budget // max(1, tk * itemsize)
    tb = max(sub, (tb // sub) * sub)
    if B <= sub:
        tb = B  # full-array block in the batch dim (always legal)
    else:
        tb = min(tb, (B // sub) * sub)

    # v7x megacore: prefer an even number of batch tiles (grid axis 0 is
    # "parallel" and split across the 2 TensorCores).  Only accept a mild
    # (<=25%) tile shrink.
    nb = pl.cdiv(B, tb)
    if nb > 1 and nb % 2 == 1:
        cand = _round_up(pl.cdiv(B, nb + 1), sub)
        if sub <= cand < tb and cand * 4 >= tb * 3 and pl.cdiv(B, cand) % 2 == 0:
            tb = cand
    return tb, tk


def lrprobe_forward(x, weight):
    """x: [B, D], weight: [1, D] (nn.Linear layout, no bias).

    Returns sigmoid(x @ weight.T).squeeze(-1) with shape [B].
    """
    B, D = x.shape
    assert weight.shape == (1, D)
    out_dtype = x.dtype
    if weight.dtype != x.dtype:
        # Keep the in-kernel multiply in x's native dtype (accumulation is f32).
        weight = weight.astype(x.dtype)
    itemsize = jnp.dtype(x.dtype).itemsize

    vmem_limit, tile_budget = _vmem_budget()
    TB, TK = _choose_tiles(B, D, itemsize, tile_budget)
    nb = pl.cdiv(B, TB)
    nk = pl.cdiv(D, TK)

    kernel = functools.partial(_lrprobe_kernel, d_in=D, block_k=TK)

    cost = pl.CostEstimate(
        flops=2 * B * D,
        transcendentals=B,
        bytes_accessed=B * D * itemsize + D * itemsize + B * itemsize,
    )

    out = pl.pallas_call(
        kernel,
        out_shape=jax.ShapeDtypeStruct((B, 1), out_dtype),
        grid_spec=pltpu.PrefetchScalarGridSpec(
            num_scalar_prefetch=0,
            grid=(nb, nk),
            in_specs=[
                # x: streamed (TB, TK) tiles, double-buffered by Pallas.
                pl.BlockSpec((TB, TK), lambda i, k: (i, k)),
                # weight: lane-dense (1, TK) slice; constant over the batch
                # axis (resident when nk == 1).
                pl.BlockSpec((1, TK), lambda i, k: (0, k)),
            ],
            # Output block index is constant over k -> accumulator-style
            # residency; written once on the last feature step.
            out_specs=pl.BlockSpec((TB, 1), lambda i, k: (i, 0)),
            scratch_shapes=[pltpu.VMEM((TB, 1), jnp.float32)],
        ),
        compiler_params=pltpu.CompilerParams(
            dimension_semantics=("parallel", "arbitrary"),
            vmem_limit_bytes=vmem_limit,
        ),
        cost_estimate=cost,
    )(x, weight)

    # squeeze(-1); no padded rows to strip since the tail tile's OOB output
    # writes are dropped by Pallas.
    return out.reshape(B)


if __name__ == "__main__":
    key = jax.random.PRNGKey(0)
    kx, kw, kx2 = jax.random.split(key, 3)

    B, D = 8, 32  # small shapes: batch=8, d_in=32
    x = jax.random.normal(kx, (B, D), dtype=jnp.float32)
    # Deterministic init mimicking nn.Linear's uniform(-1/sqrt(d_in), 1/sqrt(d_in))
    bound = 1.0 / jnp.sqrt(jnp.float32(D))
    weight = jax.random.uniform(kw, (1, D), minval=-bound, maxval=bound,
                                dtype=jnp.float32)

    y = lrprobe_forward(x, weight)
    jax.block_until_ready(y)
    y_ref = jax.nn.sigmoid(x @ weight.T)[:, 0]
    assert y.shape == (B,)
    assert jnp.allclose(y, y_ref, atol=1e-6, rtol=1e-6)

    # Ragged batch (B not a multiple of 8): exercised via partial last block,
    # no host-side padding copy.
    B2 = 13
    x2 = jax.random.normal(kx2, (B2, D), dtype=jnp.float32)
    y2 = lrprobe_forward(x2, weight)
    jax.block_until_ready(y2)
    y2_ref = jax.nn.sigmoid(x2 @ weight.T)[:, 0]
    assert y2.shape == (B2,)
    assert jnp.allclose(y2, y2_ref, atol=1e-6, rtol=1e-6)

    print("KERNEL_OK")
</pallas_src>

<mosaic_0001>
module attributes {stable_mosaic.version = 11 : i64} {
  func.func @_lrprobe_kernel(%arg0: i32, %arg1: i32, %arg2: memref<8x32xf32, #tpu.memory_space<vmem>>, %arg3: memref<1x32xf32, #tpu.memory_space<vmem>>, %arg4: memref<8x1xf32, #tpu.memory_space<vmem>>, %arg5: memref<8x1xf32, #tpu.memory_space<vmem>>) attributes {dimension_semantics = [#tpu.dimension_semantics<parallel>, #tpu.dimension_semantics<arbitrary>], iteration_bounds = array<i64: 1, 1>, scalar_prefetch = 0 : i64, scratch_operands = 1 : i64, tpu.core_type = #tpu.core_type<tc>, window_params = [{transform_indices = @transform_0, window_bounds = array<i64: 8, 32>}, {transform_indices = @transform_1, window_bounds = array<i64: 1, 32>}, {transform_indices = @transform_2, window_bounds = array<i64: 8, 1>}]} {
    %c0_i32 = arith.constant 0 : i32
    %0 = arith.cmpi eq, %arg1, %c0_i32 : i32
    %1 = arith.extui %0 : i1 to i32
    %c0_i32_0 = arith.constant 0 : i32
    %2 = arith.cmpi ne, %1, %c0_i32_0 : i32
    scf.if %2 {
      %cst_10 = arith.constant 0.000000e+00 : f32
      %15 = vector.broadcast %cst_10 : f32 to vector<8x1xf32>
      %c0_11 = arith.constant 0 : index
      %c0_12 = arith.constant 0 : index
      %16 = vector.load %arg5[%c0_11, %c0_12] : memref<8x1xf32, #tpu.memory_space<vmem>>, vector<8x1xf32>
      tpu.vector_store %arg5[%c0_11, %c0_12], %15 {strides = array<i32>} : memref<8x1xf32, #tpu.memory_space<vmem>>, vector<8x1xf32>,
    } else {
    }
    %c0 = arith.constant 0 : index
    %c0_1 = arith.constant 0 : index
    %3 = vector.load %arg2[%c0, %c0_1] : memref<8x32xf32, #tpu.memory_space<vmem>>, vector<8x32xf32>
    %c0_2 = arith.constant 0 : index
    %c0_3 = arith.constant 0 : index
    %4 = vector.load %arg3[%c0_2, %c0_3] : memref<1x32xf32, #tpu.memory_space<vmem>>, vector<1x32xf32>
    %c0_4 = arith.constant 0 : index
    %c0_5 = arith.constant 0 : index
    %5 = vector.load %arg5[%c0_4, %c0_5] : memref<8x1xf32, #tpu.memory_space<vmem>>, vector<8x1xf32>
    %6 = vector.broadcast %4 : vector<1x32xf32> to vector<8x32xf32>
    %7 = arith.mulf %3, %6 : vector<8x32xf32>
    %cst = arith.constant dense<0.000000e+00> : vector<8xf32>
    %8 = vector.multi_reduction <add>, %7, %cst [1] : vector<8x32xf32> to vector<8xf32>
    %9 = vector.shape_cast %8 : vector<8xf32> to vector<8x1xf32>
    %10 = arith.addf %5, %9 : vector<8x1xf32>
    %c0_6 = arith.constant 0 : index
    %c0_7 = arith.constant 0 : index
    %11 = vector.load %arg5[%c0_6, %c0_7] : memref<8x1xf32, #tpu.memory_space<vmem>>, vector<8x1xf32>
    tpu.vector_store %arg5[%c0_6, %c0_7], %10 {strides = array<i32>} : memref<8x1xf32, #tpu.memory_space<vmem>>, vector<8x1xf32>,
    %c0_i32_8 = arith.constant 0 : i32
    %12 = arith.cmpi eq, %arg1, %c0_i32_8 : i32
    %13 = arith.extui %12 : i1 to i32
    %c0_i32_9 = arith.constant 0 : i32
    %14 = arith.cmpi ne, %13, %c0_i32_9 : i32
    scf.if %14 {
      %c0_10 = arith.constant 0 : index
      %c0_11 = arith.constant 0 : index
      %15 = vector.load %arg5[%c0_10, %c0_11] : memref<8x1xf32, #tpu.memory_space<vmem>>, vector<8x1xf32>
      %16 = arith.negf %15 : vector<8x1xf32>
      %17 = math.exp %16 : vector<8x1xf32>
      %cst_12 = arith.constant 1.000000e+00 : f32
      %18 = vector.broadcast %cst_12 : f32 to vector<8x1xf32>
      %19 = arith.addf %18, %17 : vector<8x1xf32>
      %20 = arith.divf %18, %19 : vector<8x1xf32>
      %c0_13 = arith.constant 0 : index
      %c0_14 = arith.constant 0 : index
      %21 = vector.load %arg4[%c0_13, %c0_14] : memref<8x1xf32, #tpu.memory_space<vmem>>, vector<8x1xf32>
      tpu.vector_store %arg4[%c0_13, %c0_14], %20 {strides = array<i32>} : memref<8x1xf32, #tpu.memory_space<vmem>>, vector<8x1xf32>,
    } else {
    }
    return
  }
  func.func @transform_0(%arg0: i32, %arg1: i32) -> (i32, i32) {
    %c0_i32 = arith.constant 0 : i32
    return %arg0, %arg1 : i32, i32
  }
  func.func @transform_1(%arg0: i32, %arg1: i32) -> (i32, i32) {
    %c0_i32 = arith.constant 0 : i32
    %c0_i32_0 = arith.constant 0 : i32
    return %c0_i32, %arg1 : i32, i32
  }
  func.func @transform_2(%arg0: i32, %arg1: i32) -> (i32, i32) {
    %c0_i32 = arith.constant 0 : i32
    %c0_i32_0 = arith.constant 0 : i32
    return %arg0, %c0_i32 : i32, i32
  }
}

</mosaic_0001>

<llo_original>
// kernel: tpu_custom_call.1
$region0: #{tpu_custom_call.1}
  #allocation0 [shape = 'u32[]', space=smem, size = 0x4, offset = 0x4, fixed_abs, tag = 'smem constant byte address 0x4 - core index']
  #allocation1 [shape = 'u32[144,128]{1,0:T(1,128)}', space=vmem, size = 0x12000, scoped, tag = 'internal scratch']
  #allocation2 [shape = 'f32[8,1]{1,0:T(8,128)}', space=vmem, size = 0x1000, scoped, tag = 'scratch operand']
  %s0 = inlined_call_operand.hbm [shape: f32[8,32], index: 0, kind: input, shape index: {}]
  %s1 = inlined_call_operand.vmem [shape: f32[1,32], index: 1, kind: input, shape index: {}]
  %s2 = inlined_call_operand.vmem [shape: f32[8,1], index: 2, kind: output, shape index: {}]
  %s3 = sld [smem:[#allocation0]]
  $region30: #{tpu_custom_call.1} parent=0
    _
  %s5 = ssub.s32 1, %s3
  %s6 = scalar_select 0, %s5, %s3
  $region1: #{tpu_custom_call.1} parent=0
    #allocation3 [shape = 'u8[4096]{0}', space=vmem, size = 0x1000, scoped, tag = 'input window, operand 0, single buffered']
    #allocation4 [shape = 's32[1]{0}', space=sflag, size = 0x4, scoped, tag = 'scoped memory for tpu_custom_call.1']
    %7 = vsyncpa [#allocation4], 0
    // Predicated region
    $region2: #{tpu_custom_call.1} parent=1 // pred_check
      _
    $region3: #{tpu_custom_call.1} parent=1 // pred_check_branch
      %9 = sbr.rel (0) target = $region5
    $region4: #{tpu_custom_call.1} parent=1 // pred_region
      %s11 = ssub.s32 128, 128
      %12 = vsyncadd [#allocation4], %s11
      %s14 = sshll.u32 [#allocation3], 4
      %s15 = int_to_ptr.vmem [resolvable:$true] %s14
      %17 = dma.hbm_to_vmem [thread:$0]  %s0, 128, %s15, [#allocation4]
    $region5: #{tpu_custom_call.1} parent=1 // pred_fallthru
      _
    // Predicated region
    $region6: #{tpu_custom_call.1} parent=1 // pred_check
      _
    $region7: #{tpu_custom_call.1} parent=1 // pred_check_branch
      %19 = sbr.rel (0) target = $region9
    $region8: #{tpu_custom_call.1} parent=1 // pred_region
      _
    $region9: #{tpu_custom_call.1} parent=1 // pred_fallthru
      _
    // Predicated region
    $region10: #{tpu_custom_call.1} parent=1 // pred_check
      _
    $region11: #{tpu_custom_call.1} parent=1 // pred_check_branch
      %21 = sbr.rel (0) target = $region13
    $region12: #{tpu_custom_call.1} parent=1 // pred_region
      %22 = dma.done [#allocation4], 128
    $region13: #{tpu_custom_call.1} parent=1 // pred_fallthru
      _
    %p23 = scmp.eq.s32.totalorder 0, 0
    // Predicated region
    $region14: #{tpu_custom_call.1} parent=1 // pred_check
      %p24 = pneg %p23
    $region15: #{tpu_custom_call.1} parent=1 // pred_check_branch
      %26 = sbr.rel (%p24) target = $region17
    $region16: #{tpu_custom_call.1} parent=1 // pred_region
      %vm27 = vcmask 7168
      %28 = vst.msk [vmem:[#allocation2] sm:$0xff] %vm27, 0.0
    $region17: #{tpu_custom_call.1} parent=1 // pred_fallthru
      _
    %v29 = vld [vmem:[#allocation3] sm:$0xff]
    %v30 = vld [vmem:[%s1] sm:$0x1]
    %v31 = vld [vmem:[#allocation2] sm:$0xff]
    %v33 = vlaneseq
    %v34 = vshrl.u32 %v33, 7
    %v35 = vsub.s32 0, %v34
    %v36 = vrot.slane %v30, %v35
    %v38 = vmul.f32 %v29, %v36
    %vm39 = vcmask 261120
    %v40 = vsel %vm39, %v38, 0.0
    %41 = vadd.xlane.f32.xlu0 %v40
    %v42 = vpop.xlane.xlu0 %41
    %v43 = vadd.f32 %v31, %v42
    %vm44 = vcmask 7168
    %45 = vst.msk [vmem:[#allocation2] sm:$0xff] %vm44, %v43
    // Predicated region
    $region18: #{tpu_custom_call.1} parent=1 // pred_check
      %p46 = pneg %p23
    $region19: #{tpu_custom_call.1} parent=1 // pred_check_branch
      %48 = sbr.rel (%p46) target = $region21
    $region20: #{tpu_custom_call.1} parent=1 // pred_region
      %v49 = vld [vmem:[#allocation2] sm:$0xff]
      %v50 = vxor.u32 %v49, 2147483648
      %v51 = vmul.f32 %v50, 1.442695
      %v52 = vpow.pop %v51
      %v53 = vadd.f32 %v52, 1.0
      %v54 = vrcp.pop %v53
      %v55 = vmul.f32 1.0, %v54
      %56 = vst.msk [vmem:[%s2] sm:$0xff] %vm44, %v55
    $region21: #{tpu_custom_call.1} parent=1 // pred_fallthru
      _
    // Predicated region
    $region22: #{tpu_custom_call.1} parent=1 // pred_check
      _
    $region23: #{tpu_custom_call.1} parent=1 // pred_check_branch
      %58 = sbr.rel (0) target = $region25
    $region24: #{tpu_custom_call.1} parent=1 // pred_region
      _
    $region25: #{tpu_custom_call.1} parent=1 // pred_fallthru
      _
    // Predicated region
    $region26: #{tpu_custom_call.1} parent=1 // pred_check
      _
    $region27: #{tpu_custom_call.1} parent=1 // pred_check_branch
      %60 = sbr.rel (0) target = $region29
    $region28: #{tpu_custom_call.1} parent=1 // pred_region
      _
    $region29: #{tpu_custom_call.1} parent=1 // pred_fallthru
      _
    %61 = vsyncpa [#allocation4], 1

</llo_original>
